<compile_context>
chip_gen: v7x
topology: tpu7x:2x2x1
jax: 0.10.0
libtpu: 0.0.40
codegen_flags: <defaults>
</compile_context>

<pallas_src>
import functools

import jax
import jax.numpy as jnp
from jax.experimental import pallas as pl
from jax.experimental.pallas import tpu as pltpu


def _round_up(a, b):
    return (a + b - 1) // b * b


def _vmem_capacity_bytes():
    """Per-core VMEM capacity; conservative 64 MiB (v7x) fallback."""
    try:
        info = pltpu.get_tpu_info()
        cap = getattr(info, "vmem_capacity_bytes", None)
        if cap:
            return int(cap)
    except Exception:
        pass
    return 64 << 20


# --------------------------------------------------------------------------
# kernels
# --------------------------------------------------------------------------

def _act_quant_kernel(x_ref, xq_ref, *, q_max):
    """Per-token absmax fake quant over the FULL feature axis (K untiled)."""
    x = x_ref[...].astype(jnp.float32)
    scales = jnp.max(jnp.abs(x), axis=-1, keepdims=True)
    scales = jnp.maximum(scales, 1e-5) / q_max
    inv = 1.0 / scales                       # one reciprocal per token (tm x 1)
    xq_ref[...] = (jnp.round(x * inv) * scales).astype(xq_ref.dtype)


def _matmul_bias_kernel(xq_ref, w_ref, b_ref, o_ref):
    acc = jnp.dot(xq_ref[...], w_ref[...], preferred_element_type=jnp.float32)
    o_ref[...] = (acc + b_ref[...]).astype(o_ref.dtype)


def _fused_quant_matmul_kernel(x_ref, w_ref, b_ref, o_ref, *, q_max, mm_dtype):
    """Quant + matmul fused; used only when there is a single N tile, so the
    quant is computed exactly once per token anyway."""
    x = x_ref[...].astype(jnp.float32)
    scales = jnp.max(jnp.abs(x), axis=-1, keepdims=True)
    scales = jnp.maximum(scales, 1e-5) / q_max
    inv = 1.0 / scales
    xq = (jnp.round(x * inv) * scales).astype(mm_dtype)
    acc = jnp.dot(xq, w_ref[...], preferred_element_type=jnp.float32)
    o_ref[...] = (acc + b_ref[...]).astype(o_ref.dtype)


# --------------------------------------------------------------------------
# wrapper
# --------------------------------------------------------------------------

def make_quantized_linear(weight, bias=None, *, a_n_bits=4,
                          mm_dtype=jnp.bfloat16, tm=256, tn=None):
    """Build a QuantizedLinear forward.  Weight prep is done ONCE here.

    weight: (out_features, in_features) float
    bias:   (1, out_features) float or None
    returns forward(x) -> (..., out_features) float32
    """
    N, K = weight.shape
    Kp = _round_up(K, 128)
    w_bytes = jnp.dtype(mm_dtype).itemsize
    x_bytes_assumed = 4                      # conservative (f32 activations)

    cap = _vmem_capacity_bytes()
    budget = int(cap * 0.7)

    if tn is None:
        # v5e/v6e (128 MiB VMEM): wide 512 tiles; v7x (64 MiB): 256.
        tn = 512 if cap >= (100 << 20) else 256
    tn = min(tn, _round_up(N, 128))
    tm = min(tm, 256)

    def _mm_fp(tm_, tn_):
        # double-buffered inputs + double-buffered f32 output tile
        return (2 * (tm_ * Kp * w_bytes + Kp * tn_ * w_bytes + tn_ * 4)
                + 2 * tm_ * tn_ * 4)

    def _q_fp(tm_):
        return 2 * tm_ * Kp * (x_bytes_assumed + w_bytes)

    # Graceful degradation for large K on small-VMEM parts: shrink tn, then tm.
    while _mm_fp(tm, tn) > budget and tn > 128:
        tn //= 2
    while (_mm_fp(tm, tn) > budget or _q_fp(tm) > budget) and tm > 16:
        tm //= 2

    Np = _round_up(N, tn)
    q_max = float(2 ** (a_n_bits - 1) - 1)

    # ---- hoisted, per-layer weight/bias preparation (done once, not per call)
    w_kn = jnp.zeros((Kp, Np), mm_dtype).at[:K, :N].set(
        jnp.asarray(weight).astype(mm_dtype).T)
    if bias is None:
        b_p = jnp.zeros((1, Np), jnp.float32)
    else:
        b_p = jnp.zeros((1, Np), jnp.float32).at[:, :N].set(
            jnp.asarray(bias).reshape(1, N).astype(jnp.float32))

    vmem_cap_limit = max(32 << 20, min(int(cap * 0.95), cap - (2 << 20)))

    def forward(x):
        orig_shape = x.shape
        assert orig_shape[-1] == K, "last dim of x must equal in_features"
        x2d = x.reshape(-1, K)                       # keep native dtype in HBM
        M = x2d.shape[0]

        tm_eff = min(tm, _round_up(M, 16))           # rows/tile (mult of 16)
        Mp = _round_up(M, tm_eff)
        x_p = jnp.zeros((Mp, Kp), x2d.dtype).at[:M, :K].set(x2d)
        xi = jnp.dtype(x_p.dtype).itemsize

        n_i = Mp // tm_eff
        n_j = Np // tn

        fused_fp = (2 * (tm_eff * Kp * xi + Kp * Np * w_bytes + Np * 4)
                    + 2 * tm_eff * Np * 4)
        use_fused = (n_j == 1) and (fused_fp <= budget)

        if use_fused:
            vmem_limit = int(min(max(fused_fp + (4 << 20), 32 << 20),
                                 vmem_cap_limit))
            kernel = functools.partial(_fused_quant_matmul_kernel,
                                       q_max=q_max, mm_dtype=mm_dtype)
            cost = pl.CostEstimate(
                flops=int(2 * Mp * Kp * Np + 8 * Mp * Kp),
                transcendentals=0,
                bytes_accessed=int(Mp * Kp * xi + Kp * Np * w_bytes
                                   + Mp * Np * 4 + Np * 4))
            out2d = pl.pallas_call(
                kernel,
                out_shape=jax.ShapeDtypeStruct((Mp, Np), jnp.float32),
                grid_spec=pltpu.PrefetchScalarGridSpec(
                    num_scalar_prefetch=0,
                    grid=(n_i,),
                    in_specs=[
                        pl.BlockSpec((tm_eff, Kp), lambda i: (i, 0)),
                        pl.BlockSpec((Kp, Np), lambda i: (0, 0)),
                        pl.BlockSpec((1, Np), lambda i: (0, 0)),
                    ],
                    out_specs=pl.BlockSpec((tm_eff, Np), lambda i: (i, 0)),
                ),
                compiler_params=pltpu.CompilerParams(
                    dimension_semantics=("parallel",),
                    vmem_limit_bytes=vmem_limit),
                cost_estimate=cost,
            )(x_p, w_kn, b_p)
            return out2d[:M, :N].reshape(*orig_shape[:-1], N)

        # ---- pass 1: per-token fake-quant -> bf16 x_q (computed once) ------
        q_limit = int(min(max(_q_fp(tm_eff) + (4 << 20), 32 << 20),
                          vmem_cap_limit))
        x_q = pl.pallas_call(
            functools.partial(_act_quant_kernel, q_max=q_max),
            out_shape=jax.ShapeDtypeStruct((Mp, Kp), mm_dtype),
            grid_spec=pltpu.PrefetchScalarGridSpec(
                num_scalar_prefetch=0,
                grid=(n_i,),
                in_specs=[pl.BlockSpec((tm_eff, Kp), lambda i: (i, 0))],
                out_specs=pl.BlockSpec((tm_eff, Kp), lambda i: (i, 0)),
            ),
            compiler_params=pltpu.CompilerParams(
                dimension_semantics=("parallel",),
                vmem_limit_bytes=q_limit),
            cost_estimate=pl.CostEstimate(
                flops=int(8 * Mp * Kp), transcendentals=0,
                bytes_accessed=int(Mp * Kp * (xi + w_bytes))),
        )(x_p)

        # ---- pass 2: tiled matmul + bias -----------------------------------
        weight_stationary = Np >= Mp
        if weight_stationary:
            # N outer: each (Kp, tn) weight strip is DMA'd once, reused over M.
            grid = (n_j, n_i)
            xq_spec = pl.BlockSpec((tm_eff, Kp), lambda j, i: (i, 0))
            w_spec = pl.BlockSpec((Kp, tn), lambda j, i: (0, j))
            b_spec = pl.BlockSpec((1, tn), lambda j, i: (0, j))
            o_spec = pl.BlockSpec((tm_eff, tn), lambda j, i: (i, j))
            semantics = ("parallel", "arbitrary")   # shard N across cores
            bytes_acc = (Kp * Np * w_bytes + n_j * Mp * Kp * w_bytes
                         + Mp * Np * 4 + n_i * Np * 4)
        else:
            # M outer: each (tm, Kp) activation tile is DMA'd once, reused over N.
            grid = (n_i, n_j)
            xq_spec = pl.BlockSpec((tm_eff, Kp), lambda i, j: (i, 0))
            w_spec = pl.BlockSpec((Kp, tn), lambda i, j: (0, j))
            b_spec = pl.BlockSpec((1, tn), lambda i, j: (0, j))
            o_spec = pl.BlockSpec((tm_eff, tn), lambda i, j: (i, j))
            semantics = ("arbitrary", "parallel")
            bytes_acc = (n_i * Kp * Np * w_bytes + Mp * Kp * w_bytes
                         + Mp * Np * 4 + n_i * Np * 4)

        mm_limit = int(min(max(_mm_fp(tm_eff, tn) + (4 << 20), 32 << 20),
                           vmem_cap_limit))
        cost = pl.CostEstimate(flops=int(2 * Mp * Kp * Np), transcendentals=0,
                               bytes_accessed=int(bytes_acc))
        out2d = pl.pallas_call(
            _matmul_bias_kernel,
            out_shape=jax.ShapeDtypeStruct((Mp, Np), jnp.float32),
            grid_spec=pltpu.PrefetchScalarGridSpec(
                num_scalar_prefetch=0,
                grid=grid,
                in_specs=[xq_spec, w_spec, b_spec],
                out_specs=o_spec,
            ),
            compiler_params=pltpu.CompilerParams(
                dimension_semantics=semantics,
                vmem_limit_bytes=mm_limit),
            cost_estimate=cost,
        )(x_q, w_kn, b_p)

        return out2d[:M, :N].reshape(*orig_shape[:-1], N)

    return forward


def quantized_linear(x, weight, bias=None, **kwargs):
    """One-shot convenience wrapper (prefer make_quantized_linear for reuse)."""
    return make_quantized_linear(weight, bias, **kwargs)(x)


# --------------------------------------------------------------------------
# reference + test
# --------------------------------------------------------------------------

def _reference(x, weight, bias, a_n_bits=4, mm_dtype=jnp.bfloat16):
    """Pure-JAX reference with the exact same numerics as the kernel path."""
    q_max = float(2 ** (a_n_bits - 1) - 1)
    xf = x.astype(jnp.float32)
    scales = jnp.maximum(jnp.max(jnp.abs(xf), axis=-1, keepdims=True), 1e-5) / q_max
    inv = 1.0 / scales
    xq = (jnp.round(xf * inv) * scales).astype(mm_dtype)
    y = jax.lax.dot_general(
        xq.reshape(-1, x.shape[-1]),
        weight.astype(mm_dtype),
        dimension_numbers=(((1,), (1,)), ((), ())),
        preferred_element_type=jnp.float32,
    ).reshape(*x.shape[:-1], weight.shape[0])
    if bias is not None:
        y = y + bias.reshape(-1)
    return y


if __name__ == "__main__":
    # Small shapes consistent with the module: batch=2, seq=8, hidden 32 -> 48
    batch, seq = 2, 8
    in_features, out_features = 32, 48

    key = jax.random.PRNGKey(0)
    kx, kw = jax.random.split(key)
    x = jax.random.normal(kx, (batch, seq, in_features), dtype=jnp.float32)
    # Deterministic "randn" weight, zero bias (matches __init__ buffer shapes)
    weight = jax.random.normal(kw, (out_features, in_features), dtype=jnp.float32)
    bias = jnp.zeros((1, out_features), dtype=jnp.float32)

    # Build once (weight prep hoisted), call per forward.
    fwd = make_quantized_linear(weight, bias, a_n_bits=4)
    out = jax.block_until_ready(fwd(x))

    ref = _reference(x, weight, bias, a_n_bits=4)
    assert out.shape == (batch, seq, out_features)
    assert jnp.allclose(out, ref, atol=2e-3, rtol=2e-3), "mismatch vs reference"

    print("KERNEL_OK")
</pallas_src>

<mosaic_0001>
module attributes {stable_mosaic.version = 11 : i64} {
  func.func @_fused_quant_matmul_kernel(%arg0: i32, %arg1: memref<16x128xf32, #tpu.memory_space<vmem>>, %arg2: memref<128x128xbf16, #tpu.memory_space<vmem>>, %arg3: memref<1x128xf32, #tpu.memory_space<vmem>>, %arg4: memref<16x128xf32, #tpu.memory_space<vmem>>) attributes {dimension_semantics = [#tpu.dimension_semantics<parallel>], iteration_bounds = array<i64: 1>, scalar_prefetch = 0 : i64, scratch_operands = 0 : i64, tpu.core_type = #tpu.core_type<tc>, window_params = [{transform_indices = @transform_0, window_bounds = array<i64: 16, 128>}, {pipeline_mode = #tpu.pipeline_mode<synchronous>, transform_indices = @transform_1, window_bounds = array<i64: 128, 128>}, {pipeline_mode = #tpu.pipeline_mode<synchronous>, transform_indices = @transform_2, window_bounds = array<i64: 1, 128>}, {transform_indices = @transform_3, window_bounds = array<i64: 16, 128>}]} {
    %c0 = arith.constant 0 : index
    %c0_0 = arith.constant 0 : index
    %0 = vector.load %arg1[%c0, %c0_0] : memref<16x128xf32, #tpu.memory_space<vmem>>, vector<16x128xf32>
    %1 = math.absf %0 : vector<16x128xf32>
    %cst = arith.constant dense<0xFF800000> : vector<16xf32>
    %2 = vector.multi_reduction <maximumf>, %1, %cst [1] : vector<16x128xf32> to vector<16xf32>
    %3 = vector.shape_cast %2 : vector<16xf32> to vector<16x1xf32>
    %cst_1 = arith.constant 9.99999974E-6 : f32
    %4 = vector.broadcast %cst_1 : f32 to vector<16x1xf32>
    %5 = arith.maximumf %3, %4 : vector<16x1xf32>
    %cst_2 = arith.constant 7.000000e+00 : f32
    %6 = vector.broadcast %cst_2 : f32 to vector<16x1xf32>
    %7 = arith.divf %5, %6 : vector<16x1xf32>
    %cst_3 = arith.constant 1.000000e+00 : f32
    %8 = vector.broadcast %cst_3 : f32 to vector<16x1xf32>
    %9 = arith.divf %8, %7 : vector<16x1xf32>
    %10 = vector.broadcast %9 : vector<16x1xf32> to vector<16x128xf32>
    %11 = arith.mulf %0, %10 : vector<16x128xf32>
    %12 = math.roundeven %11 : vector<16x128xf32>
    %13 = vector.broadcast %7 : vector<16x1xf32> to vector<16x128xf32>
    %14 = arith.mulf %12, %13 : vector<16x128xf32>
    %15 = arith.truncf %14 : vector<16x128xf32> to vector<16x128xbf16>
    %c0_4 = arith.constant 0 : index
    %c0_5 = arith.constant 0 : index
    %16 = vector.load %arg2[%c0_4, %c0_5] : memref<128x128xbf16, #tpu.memory_space<vmem>>, vector<128x128xbf16>
    %cst_6 = arith.constant dense<0.000000e+00> : vector<16x128xf32>
    %17 = tpu.matmul %15, %16, %cst_6 {dimension_numbers = #tpu.dot_dimension_numbers<[1], [0], [0], [1], [0, 0, 1, 1], [], []>} : vector<16x128xbf16>, vector<128x128xbf16>, vector<16x128xf32> -> vector<16x128xf32>
    %c0_7 = arith.constant 0 : index
    %c0_8 = arith.constant 0 : index
    %18 = vector.load %arg3[%c0_7, %c0_8] : memref<1x128xf32, #tpu.memory_space<vmem>>, vector<1x128xf32>
    %19 = vector.broadcast %18 : vector<1x128xf32> to vector<16x128xf32>
    %20 = arith.addf %17, %19 : vector<16x128xf32>
    %c0_9 = arith.constant 0 : index
    %c0_10 = arith.constant 0 : index
    %21 = vector.load %arg4[%c0_9, %c0_10] : memref<16x128xf32, #tpu.memory_space<vmem>>, vector<16x128xf32>
    tpu.vector_store %arg4[%c0_9, %c0_10], %20 {strides = array<i32>} : memref<16x128xf32, #tpu.memory_space<vmem>>, vector<16x128xf32>,
    return
  }
  func.func @transform_0(%arg0: i32) -> (i32, i32) {
    %c0_i32 = arith.constant 0 : i32
    %c0_i32_0 = arith.constant 0 : i32
    return %arg0, %c0_i32 : i32, i32
  }
  func.func @transform_1(%arg0: i32) -> (i32, i32) {
    %c0_i32 = arith.constant 0 : i32
    %c0_i32_0 = arith.constant 0 : i32
    %c0_i32_1 = arith.constant 0 : i32
    return %c0_i32, %c0_i32_0 : i32, i32
  }
  func.func @transform_2(%arg0: i32) -> (i32, i32) {
    %c0_i32 = arith.constant 0 : i32
    %c0_i32_0 = arith.constant 0 : i32
    %c0_i32_1 = arith.constant 0 : i32
    return %c0_i32, %c0_i32_0 : i32, i32
  }
  func.func @transform_3(%arg0: i32) -> (i32, i32) {
    %c0_i32 = arith.constant 0 : i32
    %c0_i32_0 = arith.constant 0 : i32
    return %arg0, %c0_i32 : i32, i32
  }
}

</mosaic_0001>

<llo_original>
// kernel: tpu_custom_call.1
$region0: #{tpu_custom_call.1}
  #allocation0 [shape = 'u32[]', space=smem, size = 0x4, offset = 0x4, fixed_abs, tag = 'smem constant byte address 0x4 - core index']
  #allocation1 [shape = 'u32[144,128]{1,0:T(1,128)}', space=vmem, size = 0x12000, scoped, tag = 'internal scratch']
  %s0 = inlined_call_operand.hbm [shape: f32[16,128], index: 0, kind: input, shape index: {}]
  %s1 = inlined_call_operand.hbm [shape: bf16[128,128], index: 1, kind: input, shape index: {}]
  %s2 = inlined_call_operand.vmem [shape: f32[1,128], index: 2, kind: input, shape index: {}]
  %s3 = inlined_call_operand.hbm [shape: f32[16,128], index: 3, kind: output, shape index: {}]
  %s4 = sld [smem:[#allocation0]]
  $region30: #{tpu_custom_call.1} parent=0
    _
  %s6 = ssub.s32 1, %s4
  %s7 = scalar_select 0, %s6, %s4
  $region1: #{tpu_custom_call.1} parent=0
    #allocation2 [shape = 'u8[8192]{0}', space=vmem, size = 0x2000, scoped, tag = 'input window, operand 0, single buffered']
    #allocation3 [shape = 's32[1]{0}', space=sflag, size = 0x4, scoped, tag = 'scoped memory for tpu_custom_call.1']
    #allocation4 [shape = 's32[1]{0}', space=sflag, size = 0x4, scoped, tag = 'scoped memory for tpu_custom_call.1']
    #allocation5 [shape = 'u8[32768]{0}', space=vmem, size = 0x8000, scoped, tag = 'input window, operand 1, single buffered']
    #allocation6 [shape = 's32[1]{0}', space=sflag, size = 0x4, scoped, tag = 'scoped memory for tpu_custom_call.1']
    #allocation7 [shape = 'u8[8192]{0}', space=vmem, size = 0x2000, scoped, tag = 'output window, operand 0, single buffered']
    %8 = vsyncpa [#allocation3], 0
    %9 = vsyncpa [#allocation6], 0
    %10 = vsyncpa [#allocation4], 0
    // Predicated region
    $region2: #{tpu_custom_call.1} parent=1 // pred_check
      _
    $region3: #{tpu_custom_call.1} parent=1 // pred_check_branch
      %12 = sbr.rel (0) target = $region5
    $region4: #{tpu_custom_call.1} parent=1 // pred_region
      %s14 = ssub.s32 256, 256
      %15 = vsyncadd [#allocation3], %s14
      %s16 = sshll.u32 [#allocation2], 4
      %s17 = int_to_ptr.vmem [resolvable:$true] %s16
      %22 = dma.hbm_to_vmem [thread:$0]  %s0, 256, %s17, [#allocation3], 128, 128, 8
    $region5: #{tpu_custom_call.1} parent=1 // pred_fallthru
      _
    // Predicated region
    $region6: #{tpu_custom_call.1} parent=1 // pred_check
      _
    $region7: #{tpu_custom_call.1} parent=1 // pred_check_branch
      %24 = sbr.rel (0) target = $region9
    $region8: #{tpu_custom_call.1} parent=1 // pred_region
      %s26 = ssub.s32 1024, 1024
      %27 = vsyncadd [#allocation6], %s26
      %s28 = sshll.u32 [#allocation5], 4
      %s29 = int_to_ptr.vmem [resolvable:$true] %s28
      %34 = dma.hbm_to_vmem [thread:$0]  %s1, 1024, %s29, [#allocation6], 64, 64, 4
    $region9: #{tpu_custom_call.1} parent=1 // pred_fallthru
      _
    // Predicated region
    $region10: #{tpu_custom_call.1} parent=1 // pred_check
      _
    $region11: #{tpu_custom_call.1} parent=1 // pred_check_branch
      %36 = sbr.rel (0) target = $region13
    $region12: #{tpu_custom_call.1} parent=1 // pred_region
      _
    $region13: #{tpu_custom_call.1} parent=1 // pred_fallthru
      _
    // Predicated region
    $region14: #{tpu_custom_call.1} parent=1 // pred_check
      _
    $region15: #{tpu_custom_call.1} parent=1 // pred_check_branch
      %38 = sbr.rel (0) target = $region17
    $region16: #{tpu_custom_call.1} parent=1 // pred_region
      %39 = dma.done [#allocation3], 256
    $region17: #{tpu_custom_call.1} parent=1 // pred_fallthru
      _
    // Predicated region
    $region18: #{tpu_custom_call.1} parent=1 // pred_check
      _
    $region19: #{tpu_custom_call.1} parent=1 // pred_check_branch
      %41 = sbr.rel (0) target = $region21
    $region20: #{tpu_custom_call.1} parent=1 // pred_region
      %42 = dma.done [#allocation6], 1024
    $region21: #{tpu_custom_call.1} parent=1 // pred_fallthru
      _
    %v44 = vld [vmem:[#allocation2] sm:$0xff]
    %v45 = vld [vmem:[#allocation2 + $0x8] sm:$0xff]
    %v46 = vand.u32 2147483647, %v44
    %v47 = vand.u32 2147483647, %v45
    %48 = vmax.xlane.f32.xlu0 %v46
    %v49 = vpop.xlane.xlu0 %48
    %50 = vmax.xlane.f32.xlu0 %v47
    %v51 = vpop.xlane.xlu0 %50
    %v52 = vmax.f32 %v49, 1e-05
    %v53 = vmax.f32 %v51, 1e-05
    %v54 = vrcp.pop 7.0
    %v55 = vmul.f32 %v52, %v54
    %v56 = vmul.f32 %v53, %v54
    %v57 = vrcp.pop %v55
    %v58 = vmul.f32 1.0, %v57
    %v59 = vrcp.pop %v56
    %v60 = vmul.f32 1.0, %v59
    %v61 = vmul.f32 %v44, %v58
    %v62 = vmul.f32 %v45, %v60
    %v63 = vround.ne.pseudo %v61
    %v64 = vround.ne.pseudo %v62
    %v65 = vmul.f32 %v63, %v55
    %v66 = vmul.f32 %v64, %v56
    %v67 = vpack.c.bf16 %v66, %v65
    %v68 = vld [vmem:[#allocation5] sm:$0xf]
    %v69 = vld [vmem:[#allocation5 + $0x4] sm:$0xf]
    %v70 = vld [vmem:[#allocation5 + $0x8] sm:$0xf]
    %v71 = vld [vmem:[#allocation5 + $0xc] sm:$0xf]
    %v72 = vld [vmem:[#allocation5 + $0x10] sm:$0xf]
    %v73 = vld [vmem:[#allocation5 + $0x14] sm:$0xf]
    %v74 = vld [vmem:[#allocation5 + $0x18] sm:$0xf]
    %v75 = vld [vmem:[#allocation5 + $0x1c] sm:$0xf]
    %v76 = vld [vmem:[#allocation5 + $0x20] sm:$0xf]
    %v77 = vld [vmem:[#allocation5 + $0x24] sm:$0xf]
    %v78 = vld [vmem:[#allocation5 + $0x28] sm:$0xf]
    %v79 = vld [vmem:[#allocation5 + $0x2c] sm:$0xf]
    %v80 = vld [vmem:[#allocation5 + $0x30] sm:$0xf]
    %v81 = vld [vmem:[#allocation5 + $0x34] sm:$0xf]
    %v82 = vld [vmem:[#allocation5 + $0x38] sm:$0xf]
    %v83 = vld [vmem:[#allocation5 + $0x3c] sm:$0xf]
    %v84 = vld [vmem:[%s2] sm:$0x1]
    %v86 = vlaneseq
    %v87 = vshrl.u32 %v86, 7
    %v88 = vsub.s32 0, %v87
    %v89 = vrot.slane %v84, %v88
    %v107 = vunpack.c.l.b16 %v68
    %v108 = vunpack.c.l.b16 %v69
    %v109 = vunpack.c.l.b16 %v70
    %v110 = vunpack.c.l.b16 %v71
    %v111 = vunpack.c.l.b16 %v72
    %v112 = vunpack.c.l.b16 %v73
    %v113 = vunpack.c.l.b16 %v74
    %v114 = vunpack.c.l.b16 %v75
    %v115 = vunpack.c.l.b16 %v76
    %v116 = vunpack.c.l.b16 %v77
    %v117 = vunpack.c.l.b16 %v78
    %v118 = vunpack.c.l.b16 %v79
    %v119 = vunpack.c.l.b16 %v80
    %v120 = vunpack.c.l.b16 %v81
    %v121 = vunpack.c.l.b16 %v82
    %v122 = vunpack.c.l.b16 %v83
    %v123 = vpack.c.b16 %v108, %v107
    %v124 = vpack.c.b16 %v110, %v109
    %v125 = vpack.c.b16 %v112, %v111
    %v126 = vpack.c.b16 %v114, %v113
    %v127 = vpack.c.b16 %v116, %v115
    %v128 = vpack.c.b16 %v118, %v117
    %v129 = vpack.c.b16 %v120, %v119
    %v130 = vpack.c.b16 %v122, %v121
    %139 = vmatprep.subr.bf16.mxu0 0
    %140 = vmatpush1.bf16.msra.mxu0 %v123
    %141 = vmatprep.subr.bf16.mxu0 0
    %142 = vmatpush1.bf16.msra.mxu0 %v124
    %143 = vmatprep.subr.bf16.mxu0 0
    %144 = vmatpush1.bf16.msra.mxu0 %v125
    %145 = vmatprep.subr.bf16.mxu0 0
    %146 = vmatpush1.bf16.msra.mxu0 %v126
    %147 = vmatprep.subr.bf16.mxu0 0
    %148 = vmatpush1.bf16.msra.mxu0 %v127
    %149 = vmatprep.subr.bf16.mxu0 0
    %150 = vmatpush1.bf16.msra.mxu0 %v128
    %151 = vmatprep.subr.bf16.mxu0 0
    %152 = vmatpush1.bf16.msra.mxu0 %v129
    %153 = vmatprep.subr.bf16.mxu0 0
    %154 = vmatpush1.bf16.msra.mxu0 %v130
    %155 = vmatprep.subr.bf16.mxu0 0
    %156 = vmatpush1.bf16.msra.mxu0 0
    %157 = vmatprep.subr.bf16.mxu0 0
    %158 = vmatpush1.bf16.msra.mxu0 0
    %159 = vmatprep.subr.bf16.mxu0 0
    %160 = vmatpush1.bf16.msra.mxu0 0
    %161 = vmatprep.subr.bf16.mxu0 0
    %162 = vmatpush1.bf16.msra.mxu0 0
    %163 = vmatprep.subr.bf16.mxu0 0
    %164 = vmatpush1.bf16.msra.mxu0 0
    %165 = vmatprep.subr.bf16.mxu0 0
    %166 = vmatpush1.bf16.msra.mxu0 0
    %167 = vmatprep.subr.bf16.mxu0 0
    %168 = vmatpush1.bf16.msra.mxu0 0
    %169 = vmatprep.subr.bf16.mxu0 0
    %170 = vmatpush1.bf16.msra.mxu0 0
    %171 = vmatprep.mubr.bf16.mxu0 0
    %172 = vmatmul.mubr.bf16.gmra.mrb[0].mxu0 %v67
    %v173 = vpop.f32.mrb[0].mxu0
    %v174 = vadd.f32 %v89, %v173
    %v175 = vpop.f32.mrb[0].mxu0
    %v176 = vpop.f32.mrb[0].mxu0
    %v177 = vadd.f32 %v89, %v176
    %v178 = vpop.f32.mrb[0].mxu0
    %179 = vdwg.mxu0
    %180 = vst [vmem:[#allocation7] sm:$0xff] %v174
    %181 = vst [vmem:[#allocation7 + $0x8] sm:$0xff] %v177
    // Predicated region
    $region22: #{tpu_custom_call.1} parent=1 // pred_check
      _
    $region23: #{tpu_custom_call.1} parent=1 // pred_check_branch
      %183 = sbr.rel (0) target = $region25
    $region24: #{tpu_custom_call.1} parent=1 // pred_region
      %s185 = ssub.s32 256, 256
      %186 = vsyncadd [#allocation4], %s185
      %s187 = sshll.u32 [#allocation7], 4
      %s188 = int_to_ptr.vmem [resolvable:$true] %s187
      %193 = dma.vmem_to_hbm [thread:$0]  %s188, 256, %s3, [#allocation4], 128, 128, 8
    $region25: #{tpu_custom_call.1} parent=1 // pred_fallthru
      _
    // Predicated region
    $region26: #{tpu_custom_call.1} parent=1 // pred_check
      _
    $region27: #{tpu_custom_call.1} parent=1 // pred_check_branch
      %195 = sbr.rel (0) target = $region29
    $region28: #{tpu_custom_call.1} parent=1 // pred_region
      %196 = dma.done [#allocation4], 256
    $region29: #{tpu_custom_call.1} parent=1 // pred_fallthru
      _
    %197 = vsyncpa [#allocation3], 1
    %198 = vsyncpa [#allocation6], 1
    %199 = vsyncpa [#allocation4], 1

</llo_original>
